<compile_context>
chip_gen: v7x
topology: tpu7x:2x2x1
jax: 0.10.0
libtpu: 0.0.40
codegen_flags: <defaults>
</compile_context>

<pallas_src>
import functools

import jax
import jax.numpy as jnp
from jax.experimental import pallas as pl
from jax.experimental.pallas import tpu as pltpu


def _convt_phase_matmul_kernel(x_ref, w_ref, b_ref, o_ref):
    # x_ref: (9*Cin, NB*H*W)   im2col'd input, batch folded onto lanes
    # w_ref: (4*Cout, 9*Cin)   phase-expanded, spatially-remapped weights
    # b_ref: (4*Cout, 1)       bias replicated per output phase
    # o_ref: (4*Cout, NB*H*W)  all 4 output phases, channels-major, lane-dense
    acc = jnp.dot(w_ref[...], x_ref[...], preferred_element_type=jnp.float32)
    acc = acc + b_ref[...]                                    # bias (norm_fn == 'none')
    o_ref[...] = jnp.maximum(acc, 0.0).astype(o_ref.dtype)    # acti_fn == 'relu'


@functools.partial(jax.jit, static_argnames=("stride", "padding"))
def conv_transpose2d_block(x, weight, bias, *, stride, padding):
    """ConvTranspose2d(Cin->Cout, K, stride, padding, bias=True) + ReLU, NCHW in/out.

    weight: (Cin, Cout, K, K) -- PyTorch ConvTranspose2d layout.  bias: (Cout,).
    """
    N, Cin, H, W = x.shape
    Cin_w, Cout, K, K2 = weight.shape
    assert Cin == Cin_w and K == K2
    s, p = stride, padding
    # TODO(synk): polyphase path is specialised to K == stride + 2*padding (the
    # module's 4/2/1 config); other configs need per-phase tap cropping.
    assert s == 2 and K == 4 and p == 1, "kernel specialised to K=4, stride=2, padding=1"
    OH, OW = (H - 1) * s - 2 * p + K, (W - 1) * s - 2 * p + K      # = 2H, 2W
    HW = H * W
    NPH = s * s        # 4 output phases
    NWIN = 3           # shifted-window support per axis: ih in {j-1, j, j+1}
    f32 = jnp.float32

    # ---- batch -> lane packing: choose a batch chunk NB per grid step -------
    target_lanes = 2048                       # ~288 KiB in + 256 KiB out per block
    NB = max(1, min(N, target_lanes // HW)) if HW <= target_lanes else 1
    num_chunks = -(-N // NB)
    if num_chunks > 1 and (NB * HW) % 128 != 0:
        NB, num_chunks = N, 1                 # fall back to one full-lane block
    Np = NB * num_chunks

    # ---- input: 9 one-pixel-shifted copies, (9*Cin, Np*HW) lane-major -------
    xp = jnp.pad(x, ((0, 0), (0, 0), (1, 1), (1, 1)))              # (N,Cin,H+2,W+2)
    wins = [xp[:, :, sh:sh + H, sw:sw + W]                         # each (N,Cin,H,W)
            for sh in range(NWIN) for sw in range(NWIN)]
    x9 = jnp.stack(wins, axis=0)                                   # (9,N,Cin,H,W)
    x9 = jnp.transpose(x9, (0, 2, 1, 3, 4)).astype(f32)            # (9,Cin,N,H,W)
    x9 = x9.reshape(NWIN * NWIN * Cin, N * HW)                     # row = win*Cin+ci
    if Np != N:
        x9 = jnp.pad(x9, ((0, 0), (0, (Np - N) * HW)))

    # ---- weights: phase-expanded (4*Cout, 9*Cin) matrix, built once ---------
    # out[co, 2j+rh, 2i+rw] += x[ci, j+sh-1, i+sw-1] * w[ci, co, kh, kw]
    # with kh = rh + (K-1) - s*sh, kw = rw + (K-1) - s*sw  (zero if out of range).
    zero_blk = jnp.zeros((Cout, Cin), f32)
    cols = []
    for sh in range(NWIN):
        for sw in range(NWIN):
            rows = []
            for rh in range(s):
                for rw in range(s):
                    kh = rh + (K - 1) - s * sh
                    kw = rw + (K - 1) - s * sw
                    if 0 <= kh < K and 0 <= kw < K:
                        rows.append(weight[:, :, kh, kw].T.astype(f32))   # (Cout,Cin)
                    else:
                        rows.append(zero_blk)
            cols.append(jnp.concatenate(rows, axis=0))                    # (4*Cout,Cin)
    w_big = jnp.concatenate(cols, axis=1)                                 # (4*Cout,9*Cin)
    b_big = jnp.tile(bias.astype(f32), NPH).reshape(NPH * Cout, 1)        # (4*Cout,1)

    out_flat = pl.pallas_call(
        _convt_phase_matmul_kernel,
        out_shape=jax.ShapeDtypeStruct((NPH * Cout, Np * HW), x.dtype),
        grid_spec=pltpu.PrefetchScalarGridSpec(
            num_scalar_prefetch=0,
            grid=(num_chunks,),   # batch chunks along lanes; parallel -> v7x cores
            in_specs=[
                pl.BlockSpec((NWIN * NWIN * Cin, NB * HW), lambda b: (0, b)),
                pl.BlockSpec((NPH * Cout, NWIN * NWIN * Cin), lambda b: (0, 0)),
                pl.BlockSpec((NPH * Cout, 1), lambda b: (0, 0)),
            ],
            out_specs=pl.BlockSpec((NPH * Cout, NB * HW), lambda b: (0, b)),
        ),
        compiler_params=pltpu.CompilerParams(dimension_semantics=("parallel",)),
    )(x9, w_big, b_big)

    # ---- interleave the 4 phases back into NCHW (cheap, tiny tensor) --------
    o = out_flat[:, :N * HW]                           # drop batch lane padding
    o = o.reshape(s, s, Cout, N, H, W)                 # [rh, rw, co, n, j, i]
    o = jnp.transpose(o, (3, 2, 4, 0, 5, 1))           # [n, co, j, rh, i, rw]
    return o.reshape(N, Cout, OH, OW)                  # [n, co, 2j+rh, 2i+rw]


if __name__ == "__main__":
    N, Cin, H, W = 2, 4, 16, 16
    Cout, K, stride, padding = 8, 4, 2, 1

    key = jax.random.PRNGKey(0)
    k1, k2, k3 = jax.random.split(key, 3)
    x = jax.random.normal(k1, (N, Cin, H, W), jnp.float32)
    # Deterministic parameter init (same shapes/bounds as PyTorch default init).
    bound = 1.0 / float(jnp.sqrt(jnp.float32(Cout * K * K)))
    weight = jax.random.uniform(k2, (Cin, Cout, K, K), jnp.float32, -bound, bound)
    bias = jax.random.uniform(k3, (Cout,), jnp.float32, -bound, bound)

    out = conv_transpose2d_block(x, weight, bias, stride=stride, padding=padding)
    out = jax.block_until_ready(out)

    # Independent reference via XLA's dilated convolution + bias + ReLU.
    w_oihw = jnp.transpose(weight, (1, 0, 2, 3))[:, :, ::-1, ::-1]
    ref = jax.lax.conv_general_dilated(
        x, w_oihw, window_strides=(1, 1),
        padding=[(K - 1 - padding,) * 2, (K - 1 - padding,) * 2],
        lhs_dilation=(stride, stride),
        dimension_numbers=("NCHW", "OIHW", "NCHW"))
    ref = jnp.maximum(ref + bias[None, :, None, None], 0.0)

    OH = (H - 1) * stride - 2 * padding + K
    assert out.shape == (N, Cout, OH, OH), out.shape
    assert jnp.allclose(out, ref, atol=1e-4, rtol=1e-4), \
        float(jnp.max(jnp.abs(out - ref)))
    print("KERNEL_OK")
</pallas_src>

<mosaic_0001>
module attributes {stable_mosaic.version = 11 : i64} {
  func.func @_convt_phase_matmul_kernel(%arg0: i32, %arg1: memref<36x512xf32, #tpu.memory_space<vmem>>, %arg2: memref<32x36xf32, #tpu.memory_space<vmem>>, %arg3: memref<32x1xf32, #tpu.memory_space<vmem>>, %arg4: memref<32x512xf32, #tpu.memory_space<vmem>>) attributes {dimension_semantics = [#tpu.dimension_semantics<parallel>], iteration_bounds = array<i64: 1>, scalar_prefetch = 0 : i64, scratch_operands = 0 : i64, tpu.core_type = #tpu.core_type<tc>, window_params = [{transform_indices = @transform_0, window_bounds = array<i64: 36, 512>}, {pipeline_mode = #tpu.pipeline_mode<synchronous>, transform_indices = @transform_1, window_bounds = array<i64: 32, 36>}, {pipeline_mode = #tpu.pipeline_mode<synchronous>, transform_indices = @transform_2, window_bounds = array<i64: 32, 1>}, {transform_indices = @transform_3, window_bounds = array<i64: 32, 512>}]} {
    %c0 = arith.constant 0 : index
    %c0_0 = arith.constant 0 : index
    %0 = vector.load %arg2[%c0, %c0_0] : memref<32x36xf32, #tpu.memory_space<vmem>>, vector<32x36xf32>
    %c0_1 = arith.constant 0 : index
    %c0_2 = arith.constant 0 : index
    %1 = vector.load %arg1[%c0_1, %c0_2] : memref<36x512xf32, #tpu.memory_space<vmem>>, vector<36x512xf32>
    %cst = arith.constant dense<0.000000e+00> : vector<32x512xf32>
    %2 = tpu.matmul %0, %1, %cst {dimension_numbers = #tpu.dot_dimension_numbers<[1], [0], [0], [1], [0, 0, 1, 1], [], []>} : vector<32x36xf32>, vector<36x512xf32>, vector<32x512xf32> -> vector<32x512xf32>
    %c0_3 = arith.constant 0 : index
    %c0_4 = arith.constant 0 : index
    %3 = vector.load %arg3[%c0_3, %c0_4] : memref<32x1xf32, #tpu.memory_space<vmem>>, vector<32x1xf32>
    %4 = vector.broadcast %3 : vector<32x1xf32> to vector<32x512xf32>
    %5 = arith.addf %2, %4 : vector<32x512xf32>
    %cst_5 = arith.constant 0.000000e+00 : f32
    %6 = vector.broadcast %cst_5 : f32 to vector<32x512xf32>
    %7 = arith.maximumf %5, %6 : vector<32x512xf32>
    %c0_6 = arith.constant 0 : index
    %c0_7 = arith.constant 0 : index
    %8 = vector.load %arg4[%c0_6, %c0_7] : memref<32x512xf32, #tpu.memory_space<vmem>>, vector<32x512xf32>
    tpu.vector_store %arg4[%c0_6, %c0_7], %7 {strides = array<i32>} : memref<32x512xf32, #tpu.memory_space<vmem>>, vector<32x512xf32>,
    return
  }
  func.func @transform_0(%arg0: i32) -> (i32, i32) {
    %c0_i32 = arith.constant 0 : i32
    %c0_i32_0 = arith.constant 0 : i32
    return %c0_i32, %arg0 : i32, i32
  }
  func.func @transform_1(%arg0: i32) -> (i32, i32) {
    %c0_i32 = arith.constant 0 : i32
    %c0_i32_0 = arith.constant 0 : i32
    %c0_i32_1 = arith.constant 0 : i32
    return %c0_i32, %c0_i32_0 : i32, i32
  }
  func.func @transform_2(%arg0: i32) -> (i32, i32) {
    %c0_i32 = arith.constant 0 : i32
    %c0_i32_0 = arith.constant 0 : i32
    %c0_i32_1 = arith.constant 0 : i32
    return %c0_i32, %c0_i32_0 : i32, i32
  }
  func.func @transform_3(%arg0: i32) -> (i32, i32) {
    %c0_i32 = arith.constant 0 : i32
    %c0_i32_0 = arith.constant 0 : i32
    return %c0_i32, %arg0 : i32, i32
  }
}

</mosaic_0001>

<llo_original>
// kernel: tile.8
$region0: #{tile.8}
  #allocation0 [shape = 's32[1]{0}', space=sflag, size = 0x4, scoped, tag = 'scoped memory for tile.8']
  %s0 = inlined_call_operand.vmem [shape: f32[8], index: 0, kind: input, shape index: {}]
  %s1 = inlined_call_operand.vmem [shape: f32[4,8], index: 1, kind: output, shape index: {}]
  // Predicated region
  $region2: #{tile.8} parent=0 // pred_check
    _
  $region3: #{tile.8} parent=0 // pred_check_branch
    %3 = sbr.rel (0) target = $region5
  $region4: #{tile.8} parent=0 // pred_region
    _
  $region5: #{tile.8} parent=0 // pred_fallthru
    _
  %v4 = vld [vmem:[%s0] ss:$0 sm:$0xff]
  %5 = vst [vmem:[%s1] sm:$0xf] %v4

// kernel: tile.0
$region0: #{tile.0}
  %s0 = inlined_call_operand.vmem [shape: f32[4,8], index: 0, kind: input, shape index: {}]
  %s1 = inlined_call_operand.vmem [shape: f32[32,1], index: 1, kind: output, shape index: {}]
  $region1: #{tile.0} parent=0
    #allocation0 [shape = 'u8[4096]{0}', space=vmem, size = 0x1000, scoped, tag = 'scoped mem for input reshape']
    %s3 = sshllo.u32 0, 4
    %v4 = vld [vmem:[%s0] sm:%s3]
    %5 = vst [vmem:[#allocation0] sm:%s3] %v4
    %v6 = vld [vmem:[#allocation0] sm:$0xf]
    %vm7 = vcmask 7168
    %8 = vst.msk [vmem:[%s1] ss:$8 sm:$0xf] %vm7, %v6
    %v9 = vld [vmem:[#allocation0] sm:$0xf]
    %10 = vrot.lane.b32.xlu0 %v9, 127
    %v11 = vpop.permute.xlu0 %10
    %vm12 = vcmask 7168
    %s13 = scalar_lea.vmem %s1, 1
    %14 = vst.msk [vmem:[%s13] ss:$8 sm:$0xf] %vm12, %v11
    %v15 = vld [vmem:[#allocation0] sm:$0xf]
    %16 = vrot.lane.b32.xlu0 %v15, 126
    %v17 = vpop.permute.xlu0 %16
    %vm18 = vcmask 7168
    %s19 = scalar_lea.vmem %s1, 2
    %20 = vst.msk [vmem:[%s19] ss:$8 sm:$0xf] %vm18, %v17
    %v21 = vld [vmem:[#allocation0] sm:$0xf]
    %22 = vrot.lane.b32.xlu0 %v21, 125
    %v23 = vpop.permute.xlu0 %22
    %vm24 = vcmask 7168
    %s25 = scalar_lea.vmem %s1, 3
    %26 = vst.msk [vmem:[%s25] ss:$8 sm:$0xf] %vm24, %v23
    %v27 = vld [vmem:[#allocation0] sm:$0xf]
    %28 = vrot.lane.b32.xlu0 %v27, 124
    %v29 = vpop.permute.xlu0 %28
    %vm30 = vcmask 7168
    %s31 = scalar_lea.vmem %s1, 4
    %32 = vst.msk [vmem:[%s31] ss:$8 sm:$0xf] %vm30, %v29
    %v33 = vld [vmem:[#allocation0] sm:$0xf]
    %34 = vrot.lane.b32.xlu0 %v33, 123
    %v35 = vpop.permute.xlu0 %34
    %vm36 = vcmask 7168
    %s37 = scalar_lea.vmem %s1, 5
    %38 = vst.msk [vmem:[%s37] ss:$8 sm:$0xf] %vm36, %v35
    %v39 = vld [vmem:[#allocation0] sm:$0xf]
    %40 = vrot.lane.b32.xlu0 %v39, 122
    %v41 = vpop.permute.xlu0 %40
    %vm42 = vcmask 7168
    %s43 = scalar_lea.vmem %s1, 6
    %44 = vst.msk [vmem:[%s43] ss:$8 sm:$0xf] %vm42, %v41
    %v45 = vld [vmem:[#allocation0] sm:$0xf]
    %46 = vrot.lane.b32.xlu0 %v45, 121
    %v47 = vpop.permute.xlu0 %46
    %vm48 = vcmask 7168
    %s49 = scalar_lea.vmem %s1, 7
    %50 = vst.msk [vmem:[%s49] ss:$8 sm:$0xf] %vm48, %v47

// kernel: conv_transpose2d_block.1
$region0: #{conv_transpose2d_block.1}
  #allocation0 [shape = 'u32[]', space=smem, size = 0x4, offset = 0x4, fixed_abs, tag = 'smem constant byte address 0x4 - core index']
  #allocation1 [shape = 'u32[144,128]{1,0:T(1,128)}', space=vmem, size = 0x12000, scoped, tag = 'internal scratch']
  %s0 = inlined_call_operand.vmem [shape: f32[36,512], index: 0, kind: input, shape index: {}]
  %s1 = inlined_call_operand.vmem [shape: f32[32,36], index: 1, kind: input, shape index: {}]
  %s2 = inlined_call_operand.vmem [shape: f32[32,1], index: 2, kind: input, shape index: {}]
  %s3 = inlined_call_operand.vmem [shape: f32[32,512], index: 3, kind: output, shape index: {}]
  %s4 = sld [smem:[#allocation0]]
  $region22: #{conv_transpose2d_block.1} parent=0
    _
  %s6 = ssub.s32 1, %s4
  %s7 = scalar_select 0, %s6, %s4
  // Predicated region
  $region2: #{conv_transpose2d_block.1} parent=0 // pred_check
    _
  $region3: #{conv_transpose2d_block.1} parent=0 // pred_check_branch
    %9 = sbr.rel (0) target = $region5
  $region4: #{conv_transpose2d_block.1} parent=0 // pred_region
    _
  $region5: #{conv_transpose2d_block.1} parent=0 // pred_fallthru
    _
  // Predicated region
  $region6: #{conv_transpose2d_block.1} parent=0 // pred_check
    _
  $region7: #{conv_transpose2d_block.1} parent=0 // pred_check_branch
    %11 = sbr.rel (0) target = $region9
  $region8: #{conv_transpose2d_block.1} parent=0 // pred_region
    _
  $region9: #{conv_transpose2d_block.1} parent=0 // pred_fallthru
    _
  // Predicated region
  $region10: #{conv_transpose2d_block.1} parent=0 // pred_check
    _
  $region11: #{conv_transpose2d_block.1} parent=0 // pred_check_branch
    %13 = sbr.rel (0) target = $region13
  $region12: #{conv_transpose2d_block.1} parent=0 // pred_region
    _
  $region13: #{conv_transpose2d_block.1} parent=0 // pred_fallthru
    _
  %v14 = vld [vmem:[%s1] sm:$0xff]
  %v15 = vld [vmem:[%s1 + $0x8] sm:$0xff]
  %v16 = vld [vmem:[%s1 + $0x10] sm:$0xff]
  %v17 = vld [vmem:[%s1 + $0x18] sm:$0xff]
  %v18 = vld [vmem:[%s0] sm:$0xff]
  %v19 = vld [vmem:[%s0 + $0x8] sm:$0xff]
  %v20 = vld [vmem:[%s0 + $0x10] sm:$0xff]
  %v21 = vld [vmem:[%s0 + $0x18] sm:$0xff]
  %v22 = vld [vmem:[%s0 + $0x20] sm:$0xff]
  %v23 = vld [vmem:[%s0 + $0x28] sm:$0xff]
  %v24 = vld [vmem:[%s0 + $0x30] sm:$0xff]
  %v25 = vld [vmem:[%s0 + $0x38] sm:$0xff]
  %v26 = vld [vmem:[%s0 + $0x40] sm:$0xff]
  %v27 = vld [vmem:[%s0 + $0x48] sm:$0xff]
  %v28 = vld [vmem:[%s0 + $0x50] sm:$0xff]
  %v29 = vld [vmem:[%s0 + $0x58] sm:$0xff]
  %v30 = vld [vmem:[%s0 + $0x60] sm:$0xff]
  %v31 = vld [vmem:[%s0 + $0x68] sm:$0xff]
  %v32 = vld [vmem:[%s0 + $0x70] sm:$0xff]
  %v33 = vld [vmem:[%s0 + $0x78] sm:$0xff]
  %v34 = vld [vmem:[%s0 + $0x80] sm:$0xf]
  %v35 = vld [vmem:[%s0 + $0x88] sm:$0xf]
  %v36 = vld [vmem:[%s0 + $0x90] sm:$0xf]
  %v37 = vld [vmem:[%s0 + $0x98] sm:$0xf]
  %v38 = vld [vmem:[%s2] sm:$0xff]
  %v39 = vld [vmem:[%s2 + $0x8] sm:$0xff]
  %v40 = vld [vmem:[%s2 + $0x10] sm:$0xff]
  %v41 = vld [vmem:[%s2 + $0x18] sm:$0xff]
  %43 = vset.pattern.permute.xlu0 0
  %44 = vperm.xlu0 %43, %v38
  %v45 = vpop.permute.xlu0 %44
  %48 = vset.pattern.permute.xlu0 0
  %49 = vperm.xlu0 %48, %v39
  %v50 = vpop.permute.xlu0 %49
  %53 = vset.pattern.permute.xlu0 0
  %54 = vperm.xlu0 %53, %v40
  %v55 = vpop.permute.xlu0 %54
  %58 = vset.pattern.permute.xlu0 0
  %59 = vperm.xlu0 %58, %v41
  %v60 = vpop.permute.xlu0 %59
  %vm62 = vcmask 293888
  %v64 = vsel %vm62, %v14, 0
  %v67 = vsel %vm62, %v15, 0
  %v70 = vsel %vm62, %v16, 0
  %v73 = vsel %vm62, %v17, 0
  %vm75 = vcmask 1043456
  %v77 = vsel %vm75, %v34, 0
  %v80 = vsel %vm75, %v35, 0
  %v83 = vsel %vm75, %v36, 0
  %v86 = vsel %vm75, %v37, 0
  %88 = vmatprep.subr.mxu0 %v19
  %89 = vmatpush1.msra.mxu0 %v18
  %90 = vmatprep.subr.mxu0 %v23
  %91 = vmatpush1.msra.mxu0 %v22
  %92 = vmatprep.subr.mxu0 %v27
  %93 = vmatpush1.msra.mxu0 %v26
  %94 = vmatprep.subr.mxu0 %v31
  %95 = vmatpush1.msra.mxu0 %v30
  %96 = vmatprep.subr.mxu0 %v80
  %97 = vmatpush1.msra.mxu0 %v77
  %98 = vmatprep.subr.mxu0 0.0
  %99 = vmatpush1.msra.mxu0 0.0
  %100 = vmatprep.subr.mxu0 0.0
  %101 = vmatpush1.msra.mxu0 0.0
  %102 = vmatprep.subr.mxu0 0.0
  %103 = vmatpush1.msra.mxu0 0.0
  %104 = vmatprep.subr.mxu0 0.0
  %105 = vmatpush1.msra.mxu0 0.0
  %106 = vmatprep.subr.mxu0 0.0
  %107 = vmatpush1.msra.mxu0 0.0
  %108 = vmatprep.subr.mxu0 0.0
  %109 = vmatpush1.msra.mxu0 0.0
  %110 = vmatprep.subr.mxu0 0.0
  %111 = vmatpush1.msra.mxu0 0.0
  %112 = vmatprep.subr.mxu0 0.0
  %113 = vmatpush1.msra.mxu0 0.0
  %114 = vmatprep.subr.mxu0 0.0
  %115 = vmatpush1.msra.mxu0 0.0
  %116 = vmatprep.subr.mxu0 0.0
  %117 = vmatpush1.msra.mxu0 0.0
  %118 = vmatprep.subr.mxu0 0.0
  %119 = vmatpush1.msra.mxu0 0.0
  %120 = vmatprep.subr.mxu0 0.0
  %121 = vmatpush1.msra.mxu0 0.0
  %122 = vmatprep.subr.mxu0 0.0
  %123 = vmatpush1.msra.mxu0 0.0
  %124 = vmatprep.subr.mxu0 0.0
  %125 = vmatpush1.msra.mxu0 0.0
  %126 = vmatprep.subr.mxu0 0.0
  %127 = vmatpush1.msra.mxu0 0.0
  %128 = vmatprep.subr.mxu0 0.0
  %129 = vmatpush1.msra.mxu0 0.0
  %130 = vmatprep.subr.mxu0 0.0
  %131 = vmatpush1.msra.mxu0 0.0
  %132 = vmatprep.subr.mxu0 0.0
  %133 = vmatpush1.msra.mxu0 0.0
  %134 = vmatprep.subr.mxu0 0.0
  %135 = vmatpush1.msra.mxu0 0.0
  %136 = vmatprep.subr.mxu0 0.0
  %137 = vmatpush1.msra.mxu0 0.0
  %138 = vmatprep.subr.mxu0 0.0
  %139 = vmatpush1.msra.mxu0 0.0
  %140 = vmatprep.subr.mxu0 0.0
  %141 = vmatpush1.msra.mxu0 0.0
  %142 = vmatprep.subr.mxu0 0.0
  %143 = vmatpush1.msra.mxu0 0.0
  %144 = vmatprep.subr.mxu0 0.0
  %145 = vmatpush1.msra.mxu0 0.0
  %146 = vmatprep.subr.mxu0 0.0
  %147 = vmatpush1.msra.mxu0 0.0
  %148 = vmatprep.subr.mxu0 0.0
  %149 = vmatpush1.msra.mxu0 0.0
  %150 = vmatprep.subr.mxu0 0.0
  %151 = vmatpush1.msra.mxu0 0.0
  %152 = vmatprep.mubr.f32.mxu0 0.0
  %153 = vmatmul.mubr.f32.gmra.mrb[0].mxu0 %v64
  %v154 = vpop.f32.mrb[0].mxu0
  %v155 = vadd.f32 %v45, %v154
  %v156 = vpop.f32.mrb[0].mxu0
  %v157 = vadd.f32 %v45, %v156
  %158 = vmatprep.mubr.f32.mxu0 0.0
  %159 = vmatmul.mubr.f32.gmra.mrb[0].mxu0 %v67
  %v160 = vpop.f32.mrb[0].mxu0
  %v161 = vadd.f32 %v50, %v160
  %v162 = vpop.f32.mrb[0].mxu0
  %v163 = vadd.f32 %v50, %v162
  %164 = vmatprep.mubr.f32.mxu0 0.0
  %165 = vmatmul.mubr.f32.gmra.mrb[0].mxu0 %v70
  %v166 = vpop.f32.mrb[0].mxu0
  %v167 = vadd.f32 %v55, %v166
  %v168 = vpop.f32.mrb[0].mxu0
  %v169 = vadd.f32 %v55, %v168
  %170 = vmatprep.mubr.f32.mxu0 0.0
  %171 = vmatmul.mubr.f32.gmra.mrb[0].mxu0 %v73
  %v172 = vpop.f32.mrb[0].mxu0
  %v173 = vadd.f32 %v60, %v172
  %v174 = vpop.f32.mrb[0].mxu0
  %v175 = vadd.f32 %v60, %v174
  %176 = vdwg.mxu0
  %177 = vmatprep.subr.mxu0 %v21
  %178 = vmatpush1.msra.mxu0 %v20
  %179 = vmatprep.subr.mxu0 %v25
  %180 = vmatpush1.msra.mxu0 %v24
  %181 = vmatprep.subr.mxu0 %v29
  %182 = vmatpush1.msra.mxu0 %v28
  %183 = vmatprep.subr.mxu0 %v33
  %184 = vmatpush1.msra.mxu0 %v32
  %185 = vmatprep.subr.mxu0 %v86
  %186 = vmatpush1.msra.mxu0 %v83
  %187 = vmatprep.subr.mxu0 0.0
  %188 = vmatpush1.msra.mxu0 0.0
  %189 = vmatprep.subr.mxu0 0.0
  %190 = vmatpush1.msra.mxu0 0.0
  %191 = vmatprep.subr.mxu0 0.0
  %192 = vmatpush1.msra.mxu0 0.0
  %193 = vmatprep.subr.mxu0 0.0
  %194 = vmatpush1.msra.mxu0 0.0
  %195 = vmatprep.subr.mxu0 0.0
  %196 = vmatpush1.msra.mxu0 0.0
  %197 = vmatprep.subr.mxu0 0.0
  %198 = vmatpush1.msra.mxu0 0.0
  %199 = vmatprep.subr.mxu0 0.0
  %200 = vmatpush1.msra.mxu0 0.0
  %201 = vmatprep.subr.mxu0 0.0
  %202 = vmatpush1.msra.mxu0 0.0
  %203 = vmatprep.subr.mxu0 0.0
  %204 = vmatpush1.msra.mxu0 0.0
  %205 = vmatprep.subr.mxu0 0.0
  %206 = vmatpush1.msra.mxu0 0.0
  %207 = vmatprep.subr.mxu0 0.0
  %208 = vmatpush1.msra.mxu0 0.0
  %209 = vmatprep.subr.mxu0 0.0
  %210 = vmatpush1.msra.mxu0 0.0
  %211 = vmatprep.subr.mxu0 0.0
  %212 = vmatpush1.msra.mxu0 0.0
  %213 = vmatprep.subr.mxu0 0.0
  %214 = vmatpush1.msra.mxu0 0.0
  %215 = vmatprep.subr.mxu0 0.0
  %216 = vmatpush1.msra.mxu0 0.0
  %217 = vmatprep.subr.mxu0 0.0
  %218 = vmatpush1.msra.mxu0 0.0
  %219 = vmatprep.subr.mxu0 0.0
  %220 = vmatpush1.msra.mxu0 0.0
  %221 = vmatprep.subr.mxu0 0.0
  %222 = vmatpush1.msra.mxu0 0.0
  %223 = vmatprep.subr.mxu0 0.0
  %224 = vmatpush1.msra.mxu0 0.0
  %225 = vmatprep.subr.mxu0 0.0
  %226 = vmatpush1.msra.mxu0 0.0
  %227 = vmatprep.subr.mxu0 0.0
  %228 = vmatpush1.msra.mxu0 0.0
  %229 = vmatprep.subr.mxu0 0.0
  %230 = vmatpush1.msra.mxu0 0.0
  %231 = vmatprep.subr.mxu0 0.0
  %232 = vmatpush1.msra.mxu0 0.0
  %233 = vmatprep.subr.mxu0 0.0
  %234 = vmatpush1.msra.mxu0 0.0
  %235 = vmatprep.subr.mxu0 0.0
  %236 = vmatpush1.msra.mxu0 0.0
  %237 = vmatprep.subr.mxu0 0.0
  %238 = vmatpush1.msra.mxu0 0.0
  %239 = vmatprep.subr.mxu0 0.0
  %240 = vmatpush1.msra.mxu0 0.0
  %241 = vmatprep.mubr.f32.mxu0 0.0
  %242 = vmatmul.mubr.f32.gmra.mrb[0].mxu0 %v64
  %v243 = vpop.f32.mrb[0].mxu0
  %v244 = vadd.f32 %v45, %v243
  %v245 = vpop.f32.mrb[0].mxu0
  %v246 = vadd.f32 %v45, %v245
  %247 = vmatprep.mubr.f32.mxu0 0.0
  %248 = vmatmul.mubr.f32.gmra.mrb[0].mxu0 %v67
  %v249 = vpop.f32.mrb[0].mxu0
  %v250 = vadd.f32 %v50, %v249
  %v251 = vpop.f32.mrb[0].mxu0
  %v252 = vadd.f32 %v50, %v251
  %253 = vmatprep.mubr.f32.mxu0 0.0
  %254 = vmatmul.mubr.f32.gmra.mrb[0].mxu0 %v70
  %v255 = vpop.f32.mrb[0].mxu0
  %v256 = vadd.f32 %v55, %v255
  %v257 = vpop.f32.mrb[0].mxu0
  %v258 = vadd.f32 %v55, %v257
  %259 = vmatprep.mubr.f32.mxu0 0.0
  %260 = vmatmul.mubr.f32.gmra.mrb[0].mxu0 %v73
  %v261 = vpop.f32.mrb[0].mxu0
  %v262 = vadd.f32 %v60, %v261
  %v263 = vpop.f32.mrb[0].mxu0
  %v264 = vadd.f32 %v60, %v263
  %265 = vdwg.mxu0
  %v266 = vmax.f32 %v155, 0.0
  %v267 = vmax.f32 %v157, 0.0
  %v268 = vmax.f32 %v244, 0.0
  %v269 = vmax.f32 %v246, 0.0
  %v270 = vmax.f32 %v161, 0.0
  %v271 = vmax.f32 %v163, 0.0
  %v272 = vmax.f32 %v250, 0.0
  %v273 = vmax.f32 %v252, 0.0
  %v274 = vmax.f32 %v167, 0.0
  %v275 = vmax.f32 %v169, 0.0
  %v276 = vmax.f32 %v256, 0.0
  %v277 = vmax.f32 %v258, 0.0
  %v278 = vmax.f32 %v173, 0.0
  %v279 = vmax.f32 %v175, 0.0
  %v280 = vmax.f32 %v262, 0.0
  %v281 = vmax.f32 %v264, 0.0
  %282 = vst [vmem:[%s3] sm:$0xff] %v266
  %283 = vst [vmem:[%s3 + $0x8] sm:$0xff] %v267
  %284 = vst [vmem:[%s3 + $0x10] sm:$0xff] %v268
  %285 = vst [vmem:[%s3 + $0x18] sm:$0xff] %v269
  %286 = vst [vmem:[%s3 + $0x20] sm:$0xff] %v270
  %287 = vst [vmem:[%s3 + $0x28] sm:$0xff] %v271
  %288 = vst [vmem:[%s3 + $0x30] sm:$0xff] %v272
  %289 = vst [vmem:[%s3 + $0x38] sm:$0xff] %v273
  %290 = vst [vmem:[%s3 + $0x40] sm:$0xff] %v274
  %291 = vst [vmem:[%s3 + $0x48] sm:$0xff] %v275
  %292 = vst [vmem:[%s3 + $0x50] sm:$0xff] %v276
  %293 = vst [vmem:[%s3 + $0x58] sm:$0xff] %v277
  %294 = vst [vmem:[%s3 + $0x60] sm:$0xff] %v278
  %295 = vst [vmem:[%s3 + $0x68] sm:$0xff] %v279
  %296 = vst [vmem:[%s3 + $0x70] sm:$0xff] %v280
  %297 = vst [vmem:[%s3 + $0x78] sm:$0xff] %v281
  // Predicated region
  $region14: #{conv_transpose2d_block.1} parent=0 // pred_check
    _
  $region15: #{conv_transpose2d_block.1} parent=0 // pred_check_branch
    %299 = sbr.rel (0) target = $region17
  $region16: #{conv_transpose2d_block.1} parent=0 // pred_region
    _
  $region17: #{conv_transpose2d_block.1} parent=0 // pred_fallthru
    _
  // Predicated region
  $region18: #{conv_transpose2d_block.1} parent=0 // pred_check
    _
  $region19: #{conv_transpose2d_block.1} parent=0 // pred_check_branch
    %301 = sbr.rel (0) target = $region21
  $region20: #{conv_transpose2d_block.1} parent=0 // pred_region
    _
  $region21: #{conv_transpose2d_block.1} parent=0 // pred_fallthru
    _

</llo_original>
